<compile_context>
chip_gen: v7x
topology: tpu7x:2x2x1
jax: 0.10.0
libtpu: 0.0.40
codegen_flags: <defaults>
</compile_context>

<pallas_src>
import jax
import jax.numpy as jnp
from jax.experimental import pallas as pl
from jax.experimental.pallas import tpu as pltpu


def _round_up(x, m):
    return ((x + m - 1) // m) * m


def make_loss_fn(reg=0.0, eps=1e-6, block_rows=None, block_cols=None):
    """Build a Pallas-backed callable matching Loss(reg, eps).forward(p, n)."""

    def loss(p, n):
        assert p.ndim == 2 and n.ndim == 2 and p.shape[0] == n.shape[0]
        assert p.shape[1] == 1
        B, N = n.shape
        itemsize = n.dtype.itemsize

        # ----------------------- tile sizing -----------------------------
        CHUNK_TARGET = 6 * 1024 * 1024     # per-buffer n-tile target (bytes)
        VMEM_BUDGET = 24 * 1024 * 1024     # estimated total working set
        n_pad = _round_up(N, 128)

        # Negatives (lane) axis: whole N (rounded up to 128) unless even a
        # 32-row tile would blow the per-buffer target -> chunk it.
        if block_cols is not None:
            tn = min(_round_up(max(block_cols, 1), 128), n_pad)
        else:
            tn = (CHUNK_TARGET // (32 * itemsize)) // 128 * 128
            tn = int(min(max(tn, 128), n_pad))
        col_grid = pl.cdiv(N, tn)

        # Batch (sublane) axis: budget-based, multiple of 32, no hard cap.
        # per-row bytes = n tile (double buffered, input dtype)
        #              + ~1.5 f32 temporaries of the same width
        #              + lane-padded [tb,1] scalars (p x2, carry, temps).
        if block_rows is not None:
            tb = max(32, (block_rows // 32) * 32)
        else:
            per_row = tn * (2 * itemsize + 6) + 3 * 1024
            tb = int(VMEM_BUDGET // per_row) // 32 * 32
            tb = max(32, min(tb, 8192))
        tb = min(tb, _round_up(B, 32))
        row_grid = pl.cdiv(B, tb)

        # Keep >= ~4 row tiles when the problem is big enough that splitting
        # across v7x's two TensorCores beats the per-step overhead.
        if block_rows is None and row_grid < 4 and B * N * itemsize > 8 * 1024 * 1024:
            tb = min(_round_up(pl.cdiv(B, 4), 32), _round_up(B, 32))
            row_grid = pl.cdiv(B, tb)

        needs_col_mask = (col_grid * tn != N)
        needs_row_mask = (row_grid * tb != B)
        # Small/moderate chunk: per-row sum on the (idle) MXU instead of the
        # XLU cross-lane reduce (v7x: XLU binds at small N).  tn is always a
        # multiple of 128 and padded columns are explicitly zeroed, so the
        # contraction is fully aligned.
        use_mxu_sum = tn <= 512

        def loss_kernel(p_ref, n_ref, out_ref, acc_ref):
            i = pl.program_id(0)
            j = pl.program_id(1)

            # f32 exp on the EUP (v5e has no bf16 EUP); bf16 inputs upcast
            # after the DMA so they still get the HBM-bandwidth win.
            ne = jnp.exp(n_ref[...].astype(jnp.float32))            # [tb, tn]
            if needs_col_mask:
                col_ids = j * tn + jax.lax.broadcasted_iota(
                    jnp.int32, (tb, tn), 1)
                ne = jnp.where(col_ids < N, ne, 0.0)
            if use_mxu_sum:
                ones = jnp.ones((tn, 1), jnp.float32)
                part = jnp.dot(ne, ones,
                               preferred_element_type=jnp.float32,
                               precision=jax.lax.Precision.HIGHEST)
            else:
                part = jnp.sum(ne, axis=1, keepdims=True)            # [tb, 1]

            def finalize(sum_n):
                # TODO(synk): on v7x the [tb,1] exp/log below is lane-sparse
                # (8 useful EUP elements per vreg push); a lane-dense repack
                # of the per-row scalars would shave the residual EUP cost.
                pe = jnp.exp(p_ref[...].astype(jnp.float32))          # [tb, 1]
                prob = -jnp.log(pe / (pe + sum_n) + eps)              # [tb, 1]
                if needs_row_mask:
                    row_ids = i * tb + jax.lax.broadcasted_iota(
                        jnp.int32, (tb, 1), 0)
                    prob = jnp.where(row_ids < B, prob, 0.0)
                partial = jnp.sum(prob)
                # Per-tile partial at [0,0] of this tile's private (8,128)
                # lane-dense output block; rest zero so the wrapper sums all.
                r = jax.lax.broadcasted_iota(jnp.int32, (8, 128), 0)
                c = jax.lax.broadcasted_iota(jnp.int32, (8, 128), 1)
                out_ref[...] = jnp.where((r == 0) & (c == 0), partial, 0.0)

            if col_grid == 1:
                # Single negatives chunk: no carry, finalize immediately.
                finalize(part)
            else:
                @pl.when(j == 0)
                def _():
                    acc_ref[...] = jnp.zeros_like(acc_ref)

                acc_ref[...] += part

                @pl.when(j == col_grid - 1)
                def _():
                    finalize(acc_ref[...])

        cost = pl.CostEstimate(
            flops=2 * B * N + 8 * B,
            transcendentals=B * N + 2 * B,
            bytes_accessed=p.size * p.dtype.itemsize
            + n.size * n.dtype.itemsize
            + row_grid * 8 * 128 * 4,
        )

        acc_rows = tb if col_grid > 1 else 8
        partials = pl.pallas_call(
            loss_kernel,
            out_shape=jax.ShapeDtypeStruct((row_grid * 8, 128), jnp.float32),
            grid=(row_grid, col_grid),
            in_specs=[
                pl.BlockSpec((tb, 1), lambda i, j: (i, 0)),
                pl.BlockSpec((tb, tn), lambda i, j: (i, j)),
            ],
            out_specs=pl.BlockSpec((8, 128), lambda i, j: (i, 0)),
            scratch_shapes=[pltpu.VMEM((acc_rows, 1), jnp.float32)],
            compiler_params=pltpu.CompilerParams(
                dimension_semantics=("parallel", "arbitrary"),
                vmem_limit_bytes=48 * 1024 * 1024,
            ),
            cost_estimate=cost,
        )(p, n)

        # Tiny final reduction over a handful of floats + reg (plain XLA).
        # TODO(synk): reg/eps are baked in at trace time (same as the
        # module's __init__ constants); pass reg as a traced arg if learned.
        return jnp.sum(partials) + reg

    return loss


def loss_ref(p, n, reg=0.0, eps=1e-6):
    """Pure-JAX reference (mirrors the PyTorch forward exactly)."""
    pe = jnp.exp(p.astype(jnp.float32))
    ne = jnp.exp(n.astype(jnp.float32))
    prob = -jnp.log(pe / (pe + jnp.sum(ne, axis=1, keepdims=True)) + eps)
    return jnp.sum(prob) + reg


if __name__ == "__main__":
    key = jax.random.PRNGKey(0)
    ok = True

    def check(out, ref):
        return bool(jnp.allclose(out, ref, rtol=1e-4, atol=1e-4))

    # Case 1: ragged batch, N not a multiple of 128, forced multi row tiles.
    kp, kn = jax.random.split(jax.random.fold_in(key, 1))
    B, N = 37, 200
    p = jax.random.normal(kp, (B, 1), dtype=jnp.float32)
    n = jax.random.normal(kn, (B, N), dtype=jnp.float32)
    out = jax.block_until_ready(make_loss_fn(reg=0.5, block_rows=32)(p, n))
    ok &= check(out, loss_ref(p, n, reg=0.5))

    # Case 2: chunked negatives axis (exercises the f32 carry across the
    # "arbitrary" grid axis) with ragged rows AND ragged columns.
    kp, kn = jax.random.split(jax.random.fold_in(key, 2))
    B, N = 40, 300
    p = jax.random.normal(kp, (B, 1), dtype=jnp.float32)
    n = jax.random.normal(kn, (B, N), dtype=jnp.float32)
    out = jax.block_until_ready(
        make_loss_fn(reg=0.0, block_rows=32, block_cols=128)(p, n))
    ok &= check(out, loss_ref(p, n))

    # Case 3: default auto tiling, aligned shapes, single tile.
    kp, kn = jax.random.split(jax.random.fold_in(key, 3))
    B, N = 64, 256
    p = jax.random.normal(kp, (B, 1), dtype=jnp.float32)
    n = jax.random.normal(kn, (B, N), dtype=jnp.float32)
    out = jax.block_until_ready(make_loss_fn(reg=1.25)(p, n))
    ok &= check(out, loss_ref(p, n, reg=1.25))

    # Case 4: bf16 inputs (upcast to f32 after the DMA, inside the kernel).
    kp, kn = jax.random.split(jax.random.fold_in(key, 4))
    B, N = 48, 200
    p = jax.random.normal(kp, (B, 1), dtype=jnp.bfloat16)
    n = jax.random.normal(kn, (B, N), dtype=jnp.bfloat16)
    out = jax.block_until_ready(make_loss_fn()(p, n))
    ok &= check(out, loss_ref(p, n))

    assert ok, "Pallas loss kernel does not match reference"
    print("KERNEL_OK")
</pallas_src>

<mosaic_0001>
module attributes {stable_mosaic.version = 11 : i64} {
  func.func @loss_kernel(%arg0: i32, %arg1: i32, %arg2: memref<32x1xf32, #tpu.memory_space<vmem>>, %arg3: memref<32x256xf32, #tpu.memory_space<vmem>>, %arg4: memref<8x128xf32, #tpu.memory_space<vmem>>, %arg5: memref<8x1xf32, #tpu.memory_space<vmem>>) attributes {dimension_semantics = [#tpu.dimension_semantics<parallel>, #tpu.dimension_semantics<arbitrary>], iteration_bounds = array<i64: 2, 1>, scalar_prefetch = 0 : i64, scratch_operands = 1 : i64, tpu.core_type = #tpu.core_type<tc>, window_params = [{transform_indices = @transform_0, window_bounds = array<i64: 32, 1>}, {transform_indices = @transform_1, window_bounds = array<i64: 32, 256>}, {transform_indices = @transform_2, window_bounds = array<i64: 8, 128>}]} {
    %c0 = arith.constant 0 : index
    %c0_0 = arith.constant 0 : index
    %0 = vector.load %arg3[%c0, %c0_0] : memref<32x256xf32, #tpu.memory_space<vmem>>, vector<32x256xf32>
    %1 = math.exp %0 : vector<32x256xf32>
    %c256_i32 = arith.constant 256 : i32
    %2 = arith.muli %arg1, %c256_i32 : i32
    %3 = tpu.iota {dimensions = array<i32: 1>} : vector<32x256xi32>
    %4 = vector.broadcast %2 : i32 to vector<32x256xi32>
    %5 = arith.addi %4, %3 : vector<32x256xi32>
    %c200_i32 = arith.constant 200 : i32
    %6 = vector.broadcast %c200_i32 : i32 to vector<32x256xi32>
    %7 = arith.cmpi slt, %5, %6 : vector<32x256xi32>
    %cst = arith.constant 0.000000e+00 : f32
    %8 = vector.broadcast %cst : f32 to vector<32x256xf32>
    %9 = arith.select %7, %1, %8 : vector<32x256xi1>, vector<32x256xf32>
    %cst_1 = arith.constant 1.000000e+00 : f32
    %10 = vector.broadcast %cst_1 : f32 to vector<256x1xf32>
    %cst_2 = arith.constant dense<0.000000e+00> : vector<32x1xf32>
    %11 = tpu.matmul %9, %10, %cst_2 {dimension_numbers = #tpu.dot_dimension_numbers<[1], [0], [0], [1], [0, 0, 1, 1], [], []>, precision = #tpu.contract_precision<fp32>} : vector<32x256xf32>, vector<256x1xf32>, vector<32x1xf32> -> vector<32x1xf32>
    %c0_3 = arith.constant 0 : index
    %c0_4 = arith.constant 0 : index
    %12 = vector.load %arg2[%c0_3, %c0_4] : memref<32x1xf32, #tpu.memory_space<vmem>>, vector<32x1xf32>
    %13 = math.exp %12 : vector<32x1xf32>
    %14 = arith.addf %13, %11 : vector<32x1xf32>
    %15 = arith.divf %13, %14 : vector<32x1xf32>
    %cst_5 = arith.constant 9.99999997E-7 : f32
    %16 = vector.broadcast %cst_5 : f32 to vector<32x1xf32>
    %17 = arith.addf %15, %16 : vector<32x1xf32>
    %18 = math.log %17 : vector<32x1xf32>
    %cst_6 = arith.constant 0.000000e+00 : f32
    %19 = vector.broadcast %cst_6 : f32 to vector<32x1xf32>
    %20 = arith.subf %19, %18 : vector<32x1xf32>
    %c32_i32 = arith.constant 32 : i32
    %21 = arith.muli %arg0, %c32_i32 : i32
    %22 = tpu.iota {dimensions = array<i32: 0>} : vector<32x1xi32>
    %23 = vector.broadcast %21 : i32 to vector<32x1xi32>
    %24 = arith.addi %23, %22 : vector<32x1xi32>
    %c37_i32 = arith.constant 37 : i32
    %25 = vector.broadcast %c37_i32 : i32 to vector<32x1xi32>
    %26 = arith.cmpi slt, %24, %25 : vector<32x1xi32>
    %cst_7 = arith.constant 0.000000e+00 : f32
    %27 = vector.broadcast %cst_7 : f32 to vector<32x1xf32>
    %28 = arith.select %26, %20, %27 : vector<32x1xi1>, vector<32x1xf32>
    %29 = vector.shape_cast %28 : vector<32x1xf32> to vector<1x32x1xf32>
    %cst_8 = arith.constant dense<0.000000e+00> : vector<1xf32>
    %30 = vector.multi_reduction <add>, %29, %cst_8 [1, 2] : vector<1x32x1xf32> to vector<1xf32>
    %31 = vector.shape_cast %30 : vector<1xf32> to vector<1x1x1xf32>
    %32 = vector.extract %31[0, 0, 0] : f32 from vector<1x1x1xf32>
    %33 = tpu.iota {dimensions = array<i32: 0>} : vector<8x128xi32>
    %34 = tpu.iota {dimensions = array<i32: 1>} : vector<8x128xi32>
    %c0_i32 = arith.constant 0 : i32
    %35 = vector.broadcast %c0_i32 : i32 to vector<8x128xi32>
    %36 = arith.cmpi eq, %33, %35 : vector<8x128xi32>
    %c0_i32_9 = arith.constant 0 : i32
    %37 = vector.broadcast %c0_i32_9 : i32 to vector<8x128xi32>
    %38 = arith.cmpi eq, %34, %37 : vector<8x128xi32>
    %39 = arith.andi %36, %38 : vector<8x128xi1>
    %cst_10 = arith.constant 0.000000e+00 : f32
    %40 = vector.broadcast %32 : f32 to vector<8x128xf32>
    %41 = vector.broadcast %cst_10 : f32 to vector<8x128xf32>
    %42 = arith.select %39, %40, %41 : vector<8x128xi1>, vector<8x128xf32>
    %c0_11 = arith.constant 0 : index
    %c0_12 = arith.constant 0 : index
    %43 = vector.load %arg4[%c0_11, %c0_12] : memref<8x128xf32, #tpu.memory_space<vmem>>, vector<8x128xf32>
    tpu.vector_store %arg4[%c0_11, %c0_12], %42 {strides = array<i32>} : memref<8x128xf32, #tpu.memory_space<vmem>>, vector<8x128xf32>,
    return
  }
  func.func @transform_0(%arg0: i32, %arg1: i32) -> (i32, i32) {
    %c0_i32 = arith.constant 0 : i32
    %c0_i32_0 = arith.constant 0 : i32
    return %arg0, %c0_i32 : i32, i32
  }
  func.func @transform_1(%arg0: i32, %arg1: i32) -> (i32, i32) {
    %c0_i32 = arith.constant 0 : i32
    return %arg0, %arg1 : i32, i32
  }
  func.func @transform_2(%arg0: i32, %arg1: i32) -> (i32, i32) {
    %c0_i32 = arith.constant 0 : i32
    %c0_i32_0 = arith.constant 0 : i32
    return %arg0, %c0_i32 : i32, i32
  }
}

</mosaic_0001>

<llo_original>
// kernel: tpu_custom_call.1
$region0: #{tpu_custom_call.1}
  #allocation0 [shape = 'u32[]', space=smem, size = 0x4, offset = 0x4, fixed_abs, tag = 'smem constant byte address 0x4 - core index']
  #allocation1 [shape = 'u32[144,128]{1,0:T(1,128)}', space=vmem, size = 0x12000, scoped, tag = 'internal scratch']
  #allocation2 [shape = 'f32[8,1]{1,0:T(8,128)}', space=vmem, size = 0x1000, scoped, tag = 'scratch operand']
  %s0 = inlined_call_operand.vmem [shape: f32[37,1], index: 0, kind: input, shape index: {}]
  %s1 = inlined_call_operand.hbm [shape: f32[37,200], index: 1, kind: input, shape index: {}]
  %s2 = inlined_call_operand.hbm [shape: f32[16,128], index: 2, kind: output, shape index: {}]
  %s3 = sld [smem:[#allocation0]]
  $region45: #{tpu_custom_call.1} parent=0
    _
  %s5 = ssub.s32 1, %s3
  %s6 = scalar_select 0, %s5, %s3
  $region1: #{tpu_custom_call.1} parent=0
    #allocation3 [shape = 'u8[65536]{0}', space=vmem, size = 0x10000, scoped, tag = 'input window, operand 1']
    #allocation4 [shape = 's32[2]{0}', space=sflag, size = 0x8, scoped, tag = 'scoped memory for tpu_custom_call.1']
    #allocation5 [shape = 's32[2]{0}', space=sflag, size = 0x8, scoped, tag = 'scoped memory for tpu_custom_call.1']
    #allocation6 [shape = 'u8[8192]{0}', space=vmem, size = 0x2000, scoped, tag = 'output window, operand 0']
    %7 = vsyncpa [#allocation4], 0
    %s8 = scalar_lea.sflag [#allocation4], 1
    %9 = vsyncpa %s8, 0
    %10 = vsyncpa [#allocation5], 0
    %s11 = scalar_lea.sflag [#allocation5], 1
    %12 = vsyncpa %s11, 0
    loop: start=0, step=1, limit=4
    $region2: #{tpu_custom_call.1} parent=1 // loop_pre_header
      _
    $region3: #{tpu_custom_call.1} parent=1 // loop_header
      %s14 = sphi 0, %s18
      %p15 = scmp.ge.s32.totalorder %s14, 4
      %s21 = sphi 0, %s33
      %s22 = sphi 0, %s29
      %s23 = sphi 0, %s21
      %s24 = sphi 0, %s22
      %s25 = sphi 0, %s23
      %s26 = sphi 0, %s24
      %s36 = sphi 0, %s38
      %s39 = sphi 0, %s36
      %s40 = sphi 0, %s39
      %s56 = sphi 0, %s40
      %s64 = sphi 0, %s66
      %s67 = sphi 0, %s64
      %s68 = sphi 0, %s67
      %s84 = sphi 0, %s68
      %s90 = sphi 0, %s92
      %s93 = sphi 0, %s90
      %s94 = sphi 0, %s93
      %s110 = sphi 0, %s94
    $region4: #{tpu_custom_call.1} parent=1 // loop_header_branch
      %17 = sbr.rel (%p15) target = $region8
    $region5: #{tpu_custom_call.1} parent=1 // loop_body
      %s19 = ssub.s32 %s14, 1
      %s20 = ssub.s32 %s14, 2
      %s27 = sadd.s32 1, %s22
      %p28 = scmp.ge.s32.totalorder %s27, 1
      %s29 = scalar_select %p28, 0, %s27
      %s30 = sadd.s32 1, %s21
      %s31 = scalar_select %p28, %s30, %s21
      %p32 = scmp.ge.s32.totalorder %s31, 2
      %s33 = scalar_select %p32, 0, %s31
      %s34 = ssub.s32 %s21, %s33
      %p35 = scmp.eq.s32.totalorder %s34, 0
      %s37 = sadd.s32 %s36, 1
      %s38 = scalar_select %p35, %s36, %s37
      %p41 = pneg %p35
      %p42 = scmp.eq.s32.totalorder %s14, 1
      %p43 = por %p41, %p42
      %p44 = scmp.ne.s32.totalorder %s36, %s39
      %p45 = scmp.eq.s32.totalorder %s14, 0
      %p46 = por %p44, %p45
      %p47 = scmp.ne.s32.totalorder %s36, %s39
      %p48 = scmp.eq.s32.totalorder %s19, 1
      %p49 = por %p47, %p48
      %p50 = scmp.ne.s32.totalorder %s39, %s40
      %p51 = scmp.eq.s32.totalorder %s19, 0
      %p52 = por %p50, %p51
      %p53 = scmp.ne.s32.totalorder %s39, %s40
      %p54 = scmp.eq.s32.totalorder %s20, 1
      %p55 = por %p53, %p54
      %p57 = scmp.ne.s32.totalorder %s40, %s56
      %p58 = scmp.eq.s32.totalorder %s20, 0
      %p59 = por %p57, %p58
      %s60 = ssub.s32 %s21, %s33
      %s61 = ssub.s32 %s22, %s29
      %s62 = sor.u32 %s60, %s61
      %p63 = scmp.eq.s32.totalorder %s62, 0
      %s65 = sadd.s32 %s64, 1
      %s66 = scalar_select %p63, %s64, %s65
      %p69 = pneg %p63
      %p70 = scmp.eq.s32.totalorder %s14, 1
      %p71 = por %p69, %p70
      %p72 = scmp.ne.s32.totalorder %s64, %s67
      %p73 = scmp.eq.s32.totalorder %s14, 0
      %p74 = por %p72, %p73
      %p75 = scmp.ne.s32.totalorder %s64, %s67
      %p76 = scmp.eq.s32.totalorder %s19, 1
      %p77 = por %p75, %p76
      %p78 = scmp.ne.s32.totalorder %s67, %s68
      %p79 = scmp.eq.s32.totalorder %s19, 0
      %p80 = por %p78, %p79
      %p81 = scmp.ne.s32.totalorder %s67, %s68
      %p82 = scmp.eq.s32.totalorder %s20, 1
      %p83 = por %p81, %p82
      %p85 = scmp.ne.s32.totalorder %s68, %s84
      %p86 = scmp.eq.s32.totalorder %s20, 0
      %p87 = por %p85, %p86
      %s88 = ssub.s32 %s21, %s33
      %p89 = scmp.eq.s32.totalorder %s88, 0
      %s91 = sadd.s32 %s90, 1
      %s92 = scalar_select %p89, %s90, %s91
      %p95 = pneg %p89
      %p96 = scmp.eq.s32.totalorder %s14, 1
      %p97 = por %p95, %p96
      %p98 = scmp.ne.s32.totalorder %s90, %s93
      %p99 = scmp.eq.s32.totalorder %s14, 0
      %p100 = por %p98, %p99
      %p101 = scmp.ne.s32.totalorder %s90, %s93
      %p102 = scmp.eq.s32.totalorder %s19, 1
      %p103 = por %p101, %p102
      %p104 = scmp.ne.s32.totalorder %s93, %s94
      %p105 = scmp.eq.s32.totalorder %s19, 0
      %p106 = por %p104, %p105
      %p107 = scmp.ne.s32.totalorder %s93, %s94
      %p108 = scmp.eq.s32.totalorder %s20, 1
      %p109 = por %p107, %p108
      %p111 = scmp.ne.s32.totalorder %s94, %s110
      %p112 = scmp.eq.s32.totalorder %s20, 0
      %p113 = por %p111, %p112
      %p114 = scmp.le.s32.totalorder 1, %s14
      %p115 = scmp.lt.s32.totalorder %s14, 3
      %p116 = pnand %p114, %p115
      %p117 = pneg %p116
      // Predicated region
      $region9: #{tpu_custom_call.1} parent=5 // pred_check
        _
      $region10: #{tpu_custom_call.1} parent=5 // pred_check_branch
        %119 = sbr.rel (%p116) target = $region12
      $region11: #{tpu_custom_call.1} parent=5 // pred_region
        %s120 = ssub.s32 %s14, 1
      $region12: #{tpu_custom_call.1} parent=5 // pred_fallthru
        _
      %p121 = scmp.lt.s32.totalorder %s14, 2
      // Predicated region
      $region13: #{tpu_custom_call.1} parent=5 // pred_check
        %p122 = pneg %p121
      $region14: #{tpu_custom_call.1} parent=5 // pred_check_branch
        %124 = sbr.rel (%p122) target = $region16
      $region15: #{tpu_custom_call.1} parent=5 // pred_region
        // Predicated region
        $region17: #{tpu_custom_call.1} parent=15 // pred_check
          %p125 = pneg %p46
        $region18: #{tpu_custom_call.1} parent=15 // pred_check_branch
          %127 = sbr.rel (%p125) target = $region20
        $region19: #{tpu_custom_call.1} parent=15 // pred_region
          %s128 = smul.u32 4, %s21
          %s129 = ssub.s32 5, %s128
          %p130 = scmp.lt.s32.totalorder %s129, 4
          %s131 = scalar_select %p130, %s129, 4
          %s132 = smul.u32 128, %s131
          %p133 = scmp.lt.s32.totalorder %s128, 4
          %s134 = scalar_select %p133, %s128, 4
          %s135 = smul.addr %s134, 8
          %s136 = scalar_lea.vmem %s0, %s135
          %s137 = smul.u32 4, %s21
          %s138 = ssub.s32 5, %s137
          %p139 = scmp.lt.s32.totalorder %s138, 4
          %s140 = scalar_select %p139, %s138, 4
          %s141 = smul.u32 128, %s140
        $region20: #{tpu_custom_call.1} parent=15 // pred_fallthru
          _
        // Predicated region
        $region21: #{tpu_custom_call.1} parent=15 // pred_check
          %p142 = pneg %p74
        $region22: #{tpu_custom_call.1} parent=15 // pred_check_branch
          %144 = sbr.rel (%p142) target = $region24
        $region23: #{tpu_custom_call.1} parent=15 // pred_region
          %s145 = sand.u32 %s64, 1
          %s146 = scalar_lea.sflag [#allocation4], %s145
          %s147 = sand.u32 %s64, 1
          %s148 = smul.addr %s147, 64
          %s149 = scalar_lea.vmem [#allocation3], %s148
          %s150 = smul.u32 4, %s21
          %s151 = smul.u32 2, %s22
          %s152 = ssub.s32 5, %s150
          %p153 = scmp.lt.s32.totalorder %s152, 4
          %s154 = scalar_select %p153, %s152, 4
          %s155 = smul.u32 128, %s154
          %s156 = smul.u32 %s155, 2
          %s158 = ssub.s32 1024, %s156
          %159 = vsyncadd %s146, %s158
          %p160 = scmp.ne.s32.totalorder 0, %s156
          %s161 = smul.addr %s150, 2
          %s162 = sadd.s32 %s151, %s161
          %s163 = smul.addr %s162, 128
          %s164 = scalar_lea.hbm %s1, %s163
          %s165 = smul.u32 16, %s154
          %s166 = sshll.u32 %s149, 4
          %s167 = int_to_ptr.vmem [resolvable:$true] %s166
          %s168 = sshll.u32 %s165, 4
          %172 = dma.hbm_to_vmem [thread:$0]  (%p160), %s164, %s168, %s167, %s146, 256, 256, 16
        $region24: #{tpu_custom_call.1} parent=15 // pred_fallthru
          _
      $region16: #{tpu_custom_call.1} parent=5 // pred_fallthru
        _
      %p173 = scmp.le.s32.totalorder 1, %s14
      %p174 = scmp.lt.s32.totalorder %s14, 3
      %p175 = pnand %p173, %p174
      %p176 = pneg %p175
      // Predicated region
      $region25: #{tpu_custom_call.1} parent=5 // pred_check
        _
      $region26: #{tpu_custom_call.1} parent=5 // pred_check_branch
        %178 = sbr.rel (%p175) target = $region28
      $region27: #{tpu_custom_call.1} parent=5 // pred_region
        %s179 = ssub.s32 %s14, 1
        %s180 = sand.u32 %s67, 1
        %s181 = scalar_lea.sflag [#allocation4], %s180
        %s182 = sand.u32 %s67, 1
        %s183 = smul.addr %s182, 64
        %s184 = scalar_lea.vmem [#allocation3], %s183
        // Predicated region
        $region29: #{tpu_custom_call.1} parent=27 // pred_check
          %p185 = pneg %p80
        $region30: #{tpu_custom_call.1} parent=27 // pred_check_branch
          %187 = sbr.rel (%p185) target = $region32
        $region31: #{tpu_custom_call.1} parent=27 // pred_region
          %188 = dma.done %s181, 1024
        $region32: #{tpu_custom_call.1} parent=27 // pred_fallthru
          _
        %s189 = smul.u32 4, %s23
        %s190 = ssub.s32 5, %s189
        %p191 = scmp.lt.s32.totalorder %s190, 4
        %s192 = scalar_select %p191, %s190, 4
        %s193 = smul.u32 128, %s192
        %p194 = scmp.lt.s32.totalorder %s189, 4
        %s195 = scalar_select %p194, %s189, 4
        %s196 = smul.addr %s195, 8
        %s197 = scalar_lea.vmem %s0, %s196
        %p198 = pneg %p52
        %p199 = pneg %p49
        %s200 = sand.u32 %s67, 1
        %s201 = scalar_lea.sflag [#allocation4], %s200
        %s202 = sand.u32 %s67, 1
        %s203 = smul.addr %s202, 64
        %s204 = scalar_lea.vmem [#allocation3], %s203
        %p205 = pneg %p80
        %p206 = pneg %p77
        %p207 = pneg %p106
        %p208 = pneg %p103
        %s209 = sand.u32 %s93, 1
        %s210 = scalar_lea.sflag [#allocation5], %s209
        %s211 = sand.u32 %s93, 1
        %s212 = smul.addr %s211, 8
        %s213 = scalar_lea.vmem [#allocation6], %s212
        %s214 = smul.u32 4, %s23
        %s215 = ssub.s32 5, %s214
        %p216 = scmp.lt.s32.totalorder %s215, 4
        %s217 = scalar_select %p216, %s215, 4
        %s218 = smul.u32 128, %s217
        %p219 = scmp.lt.s32.totalorder %s214, 4
        %s220 = scalar_select %p219, %s214, 4
        %s221 = smul.addr %s220, 8
        %s222 = scalar_lea.vmem %s0, %s221
        %s223 = smul.u32 4, %s23
        %s224 = ssub.s32 5, %s223
        %p225 = scmp.lt.s32.totalorder %s224, 4
        %s226 = scalar_select %p225, %s224, 4
        %s227 = smul.u32 128, %s226
        %s228 = smul.u32 4, %s23
        %s229 = smul.u32 2, %s24
        %s230 = ssub.s32 5, %s228
        %p231 = scmp.lt.s32.totalorder %s230, 4
        %s232 = scalar_select %p231, %s230, 4
        %s233 = smul.u32 128, %s232
        %s234 = smul.u32 %s233, 2
        %v235 = vld [vmem:[%s184] sm:$0xff]
        %v236 = vld [vmem:[%s184 + $0x8] sm:$0xff]
        %v237 = vld [vmem:[%s184 + $0x10] sm:$0xff]
        %v238 = vld [vmem:[%s184 + $0x18] sm:$0xff]
        %v239 = vld [vmem:[%s184 + $0x20] sm:$0xff]
        %v240 = vld [vmem:[%s184 + $0x28] sm:$0xff]
        %v241 = vld [vmem:[%s184 + $0x30] sm:$0xff]
        %v242 = vld [vmem:[%s184 + $0x38] sm:$0xff]
        %v243 = vmul.f32 %v235, 1.442695
        %v244 = vpow.pop %v243
        %v245 = vmul.f32 %v236, 1.442695
        %v246 = vpow.pop %v245
        %v247 = vmul.f32 %v237, 1.442695
        %v248 = vpow.pop %v247
        %v249 = vmul.f32 %v238, 1.442695
        %v250 = vpow.pop %v249
        %v251 = vmul.f32 %v239, 1.442695
        %v252 = vpow.pop %v251
        %v253 = vmul.f32 %v240, 1.442695
        %v254 = vpow.pop %v253
        %v255 = vmul.f32 %v241, 1.442695
        %v256 = vpow.pop %v255
        %v257 = vmul.f32 %v242, 1.442695
        %v258 = vpow.pop %v257
        %s259 = smul.u32 %s24, 256
        %v260 = vlaneseq
        %v261 = vand.u32 %v260, 127
        %v262 = vadd.s32 %v261, 128
        %v263 = vstv %s259
        %v264 = vadd.s32 %v263, %v261
        %v265 = vadd.s32 %v263, %v262
        %vm266 = vcmp.lt.s32.totalorder %v264, 200
        %vm267 = vcmp.lt.s32.totalorder %v265, 200
        %v268 = vsel %vm266, %v244, 0.0
        %v269 = vsel %vm267, %v246, 0.0
        %v270 = vsel %vm266, %v248, 0.0
        %v271 = vsel %vm267, %v250, 0.0
        %v272 = vsel %vm266, %v252, 0.0
        %v273 = vsel %vm267, %v254, 0.0
        %v274 = vsel %vm266, %v256, 0.0
        %v275 = vsel %vm267, %v258, 0.0
        %276 = vmatprep.subr.mxu0 0.0
        %277 = vmatpush1.msra.mxu0 1.0
        %278 = vmatprep.subr.mxu0 0.0
        %279 = vmatpush1.msra.mxu0 1.0
        %280 = vmatprep.subr.mxu0 0.0
        %281 = vmatpush1.msra.mxu0 1.0
        %282 = vmatprep.subr.mxu0 0.0
        %283 = vmatpush1.msra.mxu0 1.0
        %284 = vmatprep.subr.mxu0 0.0
        %285 = vmatpush1.msra.mxu0 1.0
        %286 = vmatprep.subr.mxu0 0.0
        %287 = vmatpush1.msra.mxu0 1.0
        %288 = vmatprep.subr.mxu0 0.0
        %289 = vmatpush1.msra.mxu0 1.0
        %290 = vmatprep.subr.mxu0 0.0
        %291 = vmatpush1.msra.mxu0 1.0
        %292 = vmatprep.subr.mxu0 0.0
        %293 = vmatpush1.msra.mxu0 1.0
        %294 = vmatprep.subr.mxu0 0.0
        %295 = vmatpush1.msra.mxu0 1.0
        %296 = vmatprep.subr.mxu0 0.0
        %297 = vmatpush1.msra.mxu0 1.0
        %298 = vmatprep.subr.mxu0 0.0
        %299 = vmatpush1.msra.mxu0 1.0
        %300 = vmatprep.subr.mxu0 0.0
        %301 = vmatpush1.msra.mxu0 1.0
        %302 = vmatprep.subr.mxu0 0.0
        %303 = vmatpush1.msra.mxu0 1.0
        %304 = vmatprep.subr.mxu0 0.0
        %305 = vmatpush1.msra.mxu0 1.0
        %306 = vmatprep.subr.mxu0 0.0
        %307 = vmatpush1.msra.mxu0 1.0
        %308 = vmatprep.subr.mxu0 0.0
        %309 = vmatpush1.msra.mxu0 1.0
        %310 = vmatprep.subr.mxu0 0.0
        %311 = vmatpush1.msra.mxu0 1.0
        %312 = vmatprep.subr.mxu0 0.0
        %313 = vmatpush1.msra.mxu0 1.0
        %314 = vmatprep.subr.mxu0 0.0
        %315 = vmatpush1.msra.mxu0 1.0
        %316 = vmatprep.subr.mxu0 0.0
        %317 = vmatpush1.msra.mxu0 1.0
        %318 = vmatprep.subr.mxu0 0.0
        %319 = vmatpush1.msra.mxu0 1.0
        %320 = vmatprep.subr.mxu0 0.0
        %321 = vmatpush1.msra.mxu0 1.0
        %322 = vmatprep.subr.mxu0 0.0
        %323 = vmatpush1.msra.mxu0 1.0
        %324 = vmatprep.subr.mxu0 0.0
        %325 = vmatpush1.msra.mxu0 1.0
        %326 = vmatprep.subr.mxu0 0.0
        %327 = vmatpush1.msra.mxu0 1.0
        %328 = vmatprep.subr.mxu0 0.0
        %329 = vmatpush1.msra.mxu0 1.0
        %330 = vmatprep.subr.mxu0 0.0
        %331 = vmatpush1.msra.mxu0 1.0
        %332 = vmatprep.subr.mxu0 0.0
        %333 = vmatpush1.msra.mxu0 1.0
        %334 = vmatprep.subr.mxu0 0.0
        %335 = vmatpush1.msra.mxu0 1.0
        %336 = vmatprep.subr.mxu0 0.0
        %337 = vmatpush1.msra.mxu0 1.0
        %338 = vmatprep.subr.mxu0 0.0
        %339 = vmatpush1.msra.mxu0 1.0
        %v340 = vand.u32 %v269, 4294901760
        %v341 = vsub.f32 %v269, %v340
        %v342 = vand.u32 %v341, 4294901760
        %v343 = vsub.f32 %v341, %v342
        %v344 = vand.u32 %v343, 4294901760
        %345 = vmatprep.mubr.f32.mxu0 %v344
        %v346 = vand.u32 %v268, 4294901760
        %v347 = vsub.f32 %v268, %v346
        %v348 = vand.u32 %v347, 4294901760
        %v349 = vsub.f32 %v347, %v348
        %v350 = vand.u32 %v349, 4294901760
        %351 = vmatmul.mubr.f32.gmra.mrb[0].mxu0 %v350
        %v352 = vpop.f32.mrb[0].mxu0
        %v353 = vadd.f32 0.0, %v352
        %v354 = vpop.f32.mrb[0].mxu0
        %v355 = vand.u32 %v271, 4294901760
        %v356 = vsub.f32 %v271, %v355
        %v357 = vand.u32 %v356, 4294901760
        %v358 = vsub.f32 %v356, %v357
        %v359 = vand.u32 %v358, 4294901760
        %360 = vmatprep.mubr.f32.mxu0 %v359
        %v361 = vand.u32 %v270, 4294901760
        %v362 = vsub.f32 %v270, %v361
        %v363 = vand.u32 %v362, 4294901760
        %v364 = vsub.f32 %v362, %v363
        %v365 = vand.u32 %v364, 4294901760
        %366 = vmatmul.mubr.f32.gmra.mrb[0].mxu0 %v365
        %v367 = vpop.f32.mrb[0].mxu0
        %v368 = vadd.f32 0.0, %v367
        %v369 = vpop.f32.mrb[0].mxu0
        %v370 = vand.u32 %v273, 4294901760
        %v371 = vsub.f32 %v273, %v370
        %v372 = vand.u32 %v371, 4294901760
        %v373 = vsub.f32 %v371, %v372
        %v374 = vand.u32 %v373, 4294901760
        %375 = vmatprep.mubr.f32.mxu0 %v374
        %v376 = vand.u32 %v272, 4294901760
        %v377 = vsub.f32 %v272, %v376
        %v378 = vand.u32 %v377, 4294901760
        %v379 = vsub.f32 %v377, %v378
        %v380 = vand.u32 %v379, 4294901760
        %381 = vmatmul.mubr.f32.gmra.mrb[0].mxu0 %v380
        %v382 = vpop.f32.mrb[0].mxu0
        %v383 = vadd.f32 0.0, %v382
        %v384 = vpop.f32.mrb[0].mxu0
        %v385 = vand.u32 %v275, 4294901760
        %v386 = vsub.f32 %v275, %v385
        %v387 = vand.u32 %v386, 4294901760
        %v388 = vsub.f32 %v386, %v387
        %v389 = vand.u32 %v388, 4294901760
        %390 = vmatprep.mubr.f32.mxu0 %v389
        %v391 = vand.u32 %v274, 4294901760
        %v392 = vsub.f32 %v274, %v391
        %v393 = vand.u32 %v392, 4294901760
        %v394 = vsub.f32 %v392, %v393
        %v395 = vand.u32 %v394, 4294901760
        %396 = vmatmul.mubr.f32.gmra.mrb[0].mxu0 %v395
        %v397 = vpop.f32.mrb[0].mxu0
        %v398 = vadd.f32 0.0, %v397
        %v399 = vpop.f32.mrb[0].mxu0
        %400 = vdwg.mxu0
        %401 = vmatprep.subr.mxu0 0.0
        %402 = vmatpush1.msra.mxu0 0.0
        %403 = vmatprep.subr.mxu0 0.0
        %404 = vmatpush1.msra.mxu0 0.0
        %405 = vmatprep.subr.mxu0 0.0
        %406 = vmatpush1.msra.mxu0 0.0
        %407 = vmatprep.subr.mxu0 0.0
        %408 = vmatpush1.msra.mxu0 0.0
        %409 = vmatprep.subr.mxu0 0.0
        %410 = vmatpush1.msra.mxu0 0.0
        %411 = vmatprep.subr.mxu0 0.0
        %412 = vmatpush1.msra.mxu0 0.0
        %413 = vmatprep.subr.mxu0 0.0
        %414 = vmatpush1.msra.mxu0 0.0
        %415 = vmatprep.subr.mxu0 0.0
        %416 = vmatpush1.msra.mxu0 0.0
        %417 = vmatprep.subr.mxu0 0.0
        %418 = vmatpush1.msra.mxu0 0.0
        %419 = vmatprep.subr.mxu0 0.0
        %420 = vmatpush1.msra.mxu0 0.0
        %421 = vmatprep.subr.mxu0 0.0
        %422 = vmatpush1.msra.mxu0 0.0
        %423 = vmatprep.subr.mxu0 0.0
        %424 = vmatpush1.msra.mxu0 0.0
        %425 = vmatprep.subr.mxu0 0.0
        %426 = vmatpush1.msra.mxu0 0.0
        %427 = vmatprep.subr.mxu0 0.0
        %428 = vmatpush1.msra.mxu0 0.0
        %429 = vmatprep.subr.mxu0 0.0
        %430 = vmatpush1.msra.mxu0 0.0
        %431 = vmatprep.subr.mxu0 0.0
        %432 = vmatpush1.msra.mxu0 0.0
        %433 = vmatprep.subr.mxu0 0.0
        %434 = vmatpush1.msra.mxu0 0.0
        %435 = vmatprep.subr.mxu0 0.0
        %436 = vmatpush1.msra.mxu0 0.0
        %437 = vmatprep.subr.mxu0 0.0
        %438 = vmatpush1.msra.mxu0 0.0
        %439 = vmatprep.subr.mxu0 0.0
        %440 = vmatpush1.msra.mxu0 0.0
        %441 = vmatprep.subr.mxu0 0.0
        %442 = vmatpush1.msra.mxu0 0.0
        %443 = vmatprep.subr.mxu0 0.0
        %444 = vmatpush1.msra.mxu0 0.0
        %445 = vmatprep.subr.mxu0 0.0
        %446 = vmatpush1.msra.mxu0 0.0
        %447 = vmatprep.subr.mxu0 0.0
        %448 = vmatpush1.msra.mxu0 0.0
        %449 = vmatprep.subr.mxu0 0.0
        %450 = vmatpush1.msra.mxu0 0.0
        %451 = vmatprep.subr.mxu0 0.0
        %452 = vmatpush1.msra.mxu0 0.0
        %453 = vmatprep.subr.mxu0 0.0
        %454 = vmatpush1.msra.mxu0 0.0
        %455 = vmatprep.subr.mxu0 0.0
        %456 = vmatpush1.msra.mxu0 0.0
        %457 = vmatprep.subr.mxu0 0.0
        %458 = vmatpush1.msra.mxu0 0.0
        %459 = vmatprep.subr.mxu0 0.0
        %460 = vmatpush1.msra.mxu0 0.0
        %461 = vmatprep.subr.mxu0 0.0
        %462 = vmatpush1.msra.mxu0 0.0
        %463 = vmatprep.subr.mxu0 0.0
        %464 = vmatpush1.msra.mxu0 0.0
        %v465 = vand.u32 %v269, 4294901760
        %466 = vmatprep.mubr.f32.mxu0 %v465
        %v467 = vand.u32 %v268, 4294901760
        %468 = vmatmul.mubr.f32.gmra.mrb[0].mxu0 %v467
        %v469 = vpop.f32.mrb[0].mxu0
        %v470 = vadd.f32 %v353, %v469
        %v471 = vpop.f32.mrb[0].mxu0
        %v472 = vand.u32 %v271, 4294901760
        %473 = vmatprep.mubr.f32.mxu0 %v472
        %v474 = vand.u32 %v270, 4294901760
        %475 = vmatmul.mubr.f32.gmra.mrb[0].mxu0 %v474
        %v476 = vpop.f32.mrb[0].mxu0
        %v477 = vadd.f32 %v368, %v476
        %v478 = vpop.f32.mrb[0].mxu0
        %v479 = vand.u32 %v273, 4294901760
        %480 = vmatprep.mubr.f32.mxu0 %v479
        %v481 = vand.u32 %v272, 4294901760
        %482 = vmatmul.mubr.f32.gmra.mrb[0].mxu0 %v481
        %v483 = vpop.f32.mrb[0].mxu0
        %v484 = vadd.f32 %v383, %v483
        %v485 = vpop.f32.mrb[0].mxu0
        %v486 = vand.u32 %v275, 4294901760
        %487 = vmatprep.mubr.f32.mxu0 %v486
        %v488 = vand.u32 %v274, 4294901760
        %489 = vmatmul.mubr.f32.gmra.mrb[0].mxu0 %v488
        %v490 = vpop.f32.mrb[0].mxu0
        %v491 = vadd.f32 %v398, %v490
        %v492 = vpop.f32.mrb[0].mxu0
        %493 = vdwg.mxu0
        %494 = vmatprep.subr.mxu0 0.0
        %495 = vmatpush1.msra.mxu0 0.0
        %496 = vmatprep.subr.mxu0 0.0
        %497 = vmatpush1.msra.mxu0 0.0
        %498 = vmatprep.subr.mxu0 0.0
        %499 = vmatpush1.msra.mxu0 0.0
        %500 = vmatprep.subr.mxu0 0.0
        %501 = vmatpush1.msra.mxu0 0.0
        %502 = vmatprep.subr.mxu0 0.0
        %503 = vmatpush1.msra.mxu0 0.0
        %504 = vmatprep.subr.mxu0 0.0
        %505 = vmatpush1.msra.mxu0 0.0
        %506 = vmatprep.subr.mxu0 0.0
        %507 = vmatpush1.msra.mxu0 0.0
        %508 = vmatprep.subr.mxu0 0.0
        %509 = vmatpush1.msra.mxu0 0.0
        %510 = vmatprep.subr.mxu0 0.0
        %511 = vmatpush1.msra.mxu0 0.0
        %512 = vmatprep.subr.mxu0 0.0
        %513 = vmatpush1.msra.mxu0 0.0
        %514 = vmatprep.subr.mxu0 0.0
        %515 = vmatpush1.msra.mxu0 0.0
        %516 = vmatprep.subr.mxu0 0.0
        %517 = vmatpush1.msra.mxu0 0.0
        %518 = vmatprep.subr.mxu0 0.0
        %519 = vmatpush1.msra.mxu0 0.0
        %520 = vmatprep.subr.mxu0 0.0
        %521 = vmatpush1.msra.mxu0 0.0
        %522 = vmatprep.subr.mxu0 0.0
        %523 = vmatpush1.msra.mxu0 0.0
        %524 = vmatprep.subr.mxu0 0.0
        %525 = vmatpush1.msra.mxu0 0.0
        %526 = vmatprep.subr.mxu0 0.0
        %527 = vmatpush1.msra.mxu0 0.0
        %528 = vmatprep.subr.mxu0 0.0
        %529 = vmatpush1.msra.mxu0 0.0
        %530 = vmatprep.subr.mxu0 0.0
        %531 = vmatpush1.msra.mxu0 0.0
        %532 = vmatprep.subr.mxu0 0.0
        %533 = vmatpush1.msra.mxu0 0.0
        %534 = vmatprep.subr.mxu0 0.0
        %535 = vmatpush1.msra.mxu0 0.0
        %536 = vmatprep.subr.mxu0 0.0
        %537 = vmatpush1.msra.mxu0 0.0
        %538 = vmatprep.subr.mxu0 0.0
        %539 = vmatpush1.msra.mxu0 0.0
        %540 = vmatprep.subr.mxu0 0.0
        %541 = vmatpush1.msra.mxu0 0.0
        %542 = vmatprep.subr.mxu0 0.0
        %543 = vmatpush1.msra.mxu0 0.0
        %544 = vmatprep.subr.mxu0 0.0
        %545 = vmatpush1.msra.mxu0 0.0
        %546 = vmatprep.subr.mxu0 0.0
        %547 = vmatpush1.msra.mxu0 0.0
        %548 = vmatprep.subr.mxu0 0.0
        %549 = vmatpush1.msra.mxu0 0.0
        %550 = vmatprep.subr.mxu0 0.0
        %551 = vmatpush1.msra.mxu0 0.0
        %552 = vmatprep.subr.mxu0 0.0
        %553 = vmatpush1.msra.mxu0 0.0
        %554 = vmatprep.subr.mxu0 0.0
        %555 = vmatpush1.msra.mxu0 0.0
        %556 = vmatprep.subr.mxu0 0.0
        %557 = vmatpush1.msra.mxu0 0.0
        %v558 = vand.u32 %v269, 4294901760
        %v559 = vsub.f32 %v269, %v558
        %560 = vmatprep.mubr.f32.mxu0 %v559
        %v561 = vand.u32 %v268, 4294901760
        %v562 = vsub.f32 %v268, %v561
        %563 = vmatmul.mubr.f32.gmra.mrb[0].mxu0 %v562
        %v564 = vpop.f32.mrb[0].mxu0
        %v565 = vadd.f32 %v470, %v564
        %v566 = vpop.f32.mrb[0].mxu0
        %v567 = vand.u32 %v271, 4294901760
        %v568 = vsub.f32 %v271, %v567
        %569 = vmatprep.mubr.f32.mxu0 %v568
        %v570 = vand.u32 %v270, 4294901760
        %v571 = vsub.f32 %v270, %v570
        %572 = vmatmul.mubr.f32.gmra.mrb[0].mxu0 %v571
        %v573 = vpop.f32.mrb[0].mxu0
        %v574 = vadd.f32 %v477, %v573
        %v575 = vpop.f32.mrb[0].mxu0
        %v576 = vand.u32 %v273, 4294901760
        %v577 = vsub.f32 %v273, %v576
        %578 = vmatprep.mubr.f32.mxu0 %v577
        %v579 = vand.u32 %v272, 4294901760
        %v580 = vsub.f32 %v272, %v579
        %581 = vmatmul.mubr.f32.gmra.mrb[0].mxu0 %v580
        %v582 = vpop.f32.mrb[0].mxu0
        %v583 = vadd.f32 %v484, %v582
        %v584 = vpop.f32.mrb[0].mxu0
        %v585 = vand.u32 %v275, 4294901760
        %v586 = vsub.f32 %v275, %v585
        %587 = vmatprep.mubr.f32.mxu0 %v586
        %v588 = vand.u32 %v274, 4294901760
        %v589 = vsub.f32 %v274, %v588
        %590 = vmatmul.mubr.f32.gmra.mrb[0].mxu0 %v589
        %v591 = vpop.f32.mrb[0].mxu0
        %v592 = vadd.f32 %v491, %v591
        %v593 = vpop.f32.mrb[0].mxu0
        %594 = vdwg.mxu0
        %595 = vmatprep.subr.mxu0 0.0
        %596 = vmatpush1.msra.mxu0 1.0
        %597 = vmatprep.subr.mxu0 0.0
        %598 = vmatpush1.msra.mxu0 1.0
        %599 = vmatprep.subr.mxu0 0.0
        %600 = vmatpush1.msra.mxu0 1.0
        %601 = vmatprep.subr.mxu0 0.0
        %602 = vmatpush1.msra.mxu0 1.0
        %603 = vmatprep.subr.mxu0 0.0
        %604 = vmatpush1.msra.mxu0 1.0
        %605 = vmatprep.subr.mxu0 0.0
        %606 = vmatpush1.msra.mxu0 1.0
        %607 = vmatprep.subr.mxu0 0.0
        %608 = vmatpush1.msra.mxu0 1.0
        %609 = vmatprep.subr.mxu0 0.0
        %610 = vmatpush1.msra.mxu0 1.0
        %611 = vmatprep.subr.mxu0 0.0
        %612 = vmatpush1.msra.mxu0 1.0
        %613 = vmatprep.subr.mxu0 0.0
        %614 = vmatpush1.msra.mxu0 1.0
        %615 = vmatprep.subr.mxu0 0.0
        %616 = vmatpush1.msra.mxu0 1.0
        %617 = vmatprep.subr.mxu0 0.0
        %618 = vmatpush1.msra.mxu0 1.0
        %619 = vmatprep.subr.mxu0 0.0
        %620 = vmatpush1.msra.mxu0 1.0
        %621 = vmatprep.subr.mxu0 0.0
        %622 = vmatpush1.msra.mxu0 1.0
        %623 = vmatprep.subr.mxu0 0.0
        %624 = vmatpush1.msra.mxu0 1.0
        %625 = vmatprep.subr.mxu0 0.0
        %626 = vmatpush1.msra.mxu0 1.0
        %627 = vmatprep.subr.mxu0 0.0
        %628 = vmatpush1.msra.mxu0 1.0
        %629 = vmatprep.subr.mxu0 0.0
        %630 = vmatpush1.msra.mxu0 1.0
        %631 = vmatprep.subr.mxu0 0.0
        %632 = vmatpush1.msra.mxu0 1.0
        %633 = vmatprep.subr.mxu0 0.0
        %634 = vmatpush1.msra.mxu0 1.0
        %635 = vmatprep.subr.mxu0 0.0
        %636 = vmatpush1.msra.mxu0 1.0
        %637 = vmatprep.subr.mxu0 0.0
        %638 = vmatpush1.msra.mxu0 1.0
        %639 = vmatprep.subr.mxu0 0.0
        %640 = vmatpush1.msra.mxu0 1.0
        %641 = vmatprep.subr.mxu0 0.0
        %642 = vmatpush1.msra.mxu0 1.0
        %643 = vmatprep.subr.mxu0 0.0
        %644 = vmatpush1.msra.mxu0 1.0
        %645 = vmatprep.subr.mxu0 0.0
        %646 = vmatpush1.msra.mxu0 1.0
        %647 = vmatprep.subr.mxu0 0.0
        %648 = vmatpush1.msra.mxu0 1.0
        %649 = vmatprep.subr.mxu0 0.0
        %650 = vmatpush1.msra.mxu0 1.0
        %651 = vmatprep.subr.mxu0 0.0
        %652 = vmatpush1.msra.mxu0 1.0
        %653 = vmatprep.subr.mxu0 0.0
        %654 = vmatpush1.msra.mxu0 1.0
        %655 = vmatprep.subr.mxu0 0.0
        %656 = vmatpush1.msra.mxu0 1.0
        %657 = vmatprep.subr.mxu0 0.0
        %658 = vmatpush1.msra.mxu0 1.0
        %v659 = vand.u32 %v269, 4294901760
        %v660 = vsub.f32 %v269, %v659
        %v661 = vand.u32 %v660, 4294901760
        %662 = vmatprep.mubr.f32.mxu0 %v661
        %v663 = vand.u32 %v268, 4294901760
        %v664 = vsub.f32 %v268, %v663
        %v665 = vand.u32 %v664, 4294901760
        %666 = vmatmul.mubr.f32.gmra.mrb[0].mxu0 %v665
        %v667 = vpop.f32.mrb[0].mxu0
        %v668 = vadd.f32 %v565, %v667
        %v669 = vpop.f32.mrb[0].mxu0
        %v670 = vand.u32 %v271, 4294901760
        %v671 = vsub.f32 %v271, %v670
        %v672 = vand.u32 %v671, 4294901760
        %673 = vmatprep.mubr.f32.mxu0 %v672
        %v674 = vand.u32 %v270, 4294901760
        %v675 = vsub.f32 %v270, %v674
        %v676 = vand.u32 %v675, 4294901760
        %677 = vmatmul.mubr.f32.gmra.mrb[0].mxu0 %v676
        %v678 = vpop.f32.mrb[0].mxu0
        %v679 = vadd.f32 %v574, %v678
        %v680 = vpop.f32.mrb[0].mxu0
        %v681 = vand.u32 %v273, 4294901760
        %v682 = vsub.f32 %v273, %v681
        %v683 = vand.u32 %v682, 4294901760
        %684 = vmatprep.mubr.f32.mxu0 %v683
        %v685 = vand.u32 %v272, 4294901760
        %v686 = vsub.f32 %v272, %v685
        %v687 = vand.u32 %v686, 4294901760
        %688 = vmatmul.mubr.f32.gmra.mrb[0].mxu0 %v687
        %v689 = vpop.f32.mrb[0].mxu0
        %v690 = vadd.f32 %v583, %v689
        %v691 = vpop.f32.mrb[0].mxu0
        %v692 = vand.u32 %v275, 4294901760
        %v693 = vsub.f32 %v275, %v692
        %v694 = vand.u32 %v693, 4294901760
        %695 = vmatprep.mubr.f32.mxu0 %v694
        %v696 = vand.u32 %v274, 4294901760
        %v697 = vsub.f32 %v274, %v696
        %v698 = vand.u32 %v697, 4294901760
        %699 = vmatmul.mubr.f32.gmra.mrb[0].mxu0 %v698
        %v700 = vpop.f32.mrb[0].mxu0
        %v701 = vadd.f32 %v592, %v700
        %v702 = vpop.f32.mrb[0].mxu0
        %703 = vdwg.mxu0
        %704 = vmatprep.subr.mxu0 0.0
        %705 = vmatpush1.msra.mxu0 0.0
        %706 = vmatprep.subr.mxu0 0.0
        %707 = vmatpush1.msra.mxu0 0.0
        %708 = vmatprep.subr.mxu0 0.0
        %709 = vmatpush1.msra.mxu0 0.0
        %710 = vmatprep.subr.mxu0 0.0
        %711 = vmatpush1.msra.mxu0 0.0
        %712 = vmatprep.subr.mxu0 0.0
        %713 = vmatpush1.msra.mxu0 0.0
        %714 = vmatprep.subr.mxu0 0.0
        %715 = vmatpush1.msra.mxu0 0.0
        %716 = vmatprep.subr.mxu0 0.0
        %717 = vmatpush1.msra.mxu0 0.0
        %718 = vmatprep.subr.mxu0 0.0
        %719 = vmatpush1.msra.mxu0 0.0
        %720 = vmatprep.subr.mxu0 0.0
        %721 = vmatpush1.msra.mxu0 0.0
        %722 = vmatprep.subr.mxu0 0.0
        %723 = vmatpush1.msra.mxu0 0.0
        %724 = vmatprep.subr.mxu0 0.0
        %725 = vmatpush1.msra.mxu0 0.0
        %726 = vmatprep.subr.mxu0 0.0
        %727 = vmatpush1.msra.mxu0 0.0
        %728 = vmatprep.subr.mxu0 0.0
        %729 = vmatpush1.msra.mxu0 0.0
        %730 = vmatprep.subr.mxu0 0.0
        %731 = vmatpush1.msra.mxu0 0.0
        %732 = vmatprep.subr.mxu0 0.0
        %733 = vmatpush1.msra.mxu0 0.0
        %734 = vmatprep.subr.mxu0 0.0
        %735 = vmatpush1.msra.mxu0 0.0
        %736 = vmatprep.subr.mxu0 0.0
        %737 = vmatpush1.msra.mxu0 0.0
        %738 = vmatprep.subr.mxu0 0.0
        %739 = vmatpush1.msra.mxu0 0.0
        %740 = vmatprep.subr.mxu0 0.0
        %741 = vmatpush1.msra.mxu0 0.0
        %742 = vmatprep.subr.mxu0 0.0
        %743 = vmatpush1.msra.mxu0 0.0
        %744 = vmatprep.subr.mxu0 0.0
        %745 = vmatpush1.msra.mxu0 0.0
        %746 = vmatprep.subr.mxu0 0.0
        %747 = vmatpush1.msra.mxu0 0.0
        %748 = vmatprep.subr.mxu0 0.0
        %749 = vmatpush1.msra.mxu0 0.0
        %750 = vmatprep.subr.mxu0 0.0
        %751 = vmatpush1.msra.mxu0 0.0
        %752 = vmatprep.subr.mxu0 0.0
        %753 = vmatpush1.msra.mxu0 0.0
        %754 = vmatprep.subr.mxu0 0.0
        %755 = vmatpush1.msra.mxu0 0.0
        %756 = vmatprep.subr.mxu0 0.0
        %757 = vmatpush1.msra.mxu0 0.0
        %758 = vmatprep.subr.mxu0 0.0
        %759 = vmatpush1.msra.mxu0 0.0
        %760 = vmatprep.subr.mxu0 0.0
        %761 = vmatpush1.msra.mxu0 0.0
        %762 = vmatprep.subr.mxu0 0.0
        %763 = vmatpush1.msra.mxu0 0.0
        %764 = vmatprep.subr.mxu0 0.0
        %765 = vmatpush1.msra.mxu0 0.0
        %766 = vmatprep.subr.mxu0 0.0
        %767 = vmatpush1.msra.mxu0 0.0
        %v768 = vand.u32 %v269, 4294901760
        %769 = vmatprep.mubr.f32.mxu0 %v768
        %v770 = vand.u32 %v268, 4294901760
        %771 = vmatmul.mubr.f32.gmra.mrb[0].mxu0 %v770
        %v772 = vpop.f32.mrb[0].mxu0
        %v773 = vadd.f32 %v668, %v772
        %v774 = vpop.f32.mrb[0].mxu0
        %v775 = vand.u32 %v271, 4294901760
        %776 = vmatprep.mubr.f32.mxu0 %v775
        %v777 = vand.u32 %v270, 4294901760
        %778 = vmatmul.mubr.f32.gmra.mrb[0].mxu0 %v777
        %v779 = vpop.f32.mrb[0].mxu0
        %v780 = vadd.f32 %v679, %v779
        %v781 = vpop.f32.mrb[0].mxu0
        %v782 = vand.u32 %v273, 4294901760
        %783 = vmatprep.mubr.f32.mxu0 %v782
        %v784 = vand.u32 %v272, 4294901760
        %785 = vmatmul.mubr.f32.gmra.mrb[0].mxu0 %v784
        %v786 = vpop.f32.mrb[0].mxu0
        %v787 = vadd.f32 %v690, %v786
        %v788 = vpop.f32.mrb[0].mxu0
        %v789 = vand.u32 %v275, 4294901760
        %790 = vmatprep.mubr.f32.mxu0 %v789
        %v791 = vand.u32 %v274, 4294901760
        %792 = vmatmul.mubr.f32.gmra.mrb[0].mxu0 %v791
        %v793 = vpop.f32.mrb[0].mxu0
        %v794 = vadd.f32 %v701, %v793
        %v795 = vpop.f32.mrb[0].mxu0
        %796 = vdwg.mxu0
        %797 = vmatprep.subr.mxu0 0.0
        %798 = vmatpush1.msra.mxu0 1.0
        %799 = vmatprep.subr.mxu0 0.0
        %800 = vmatpush1.msra.mxu0 1.0
        %801 = vmatprep.subr.mxu0 0.0
        %802 = vmatpush1.msra.mxu0 1.0
        %803 = vmatprep.subr.mxu0 0.0
        %804 = vmatpush1.msra.mxu0 1.0
        %805 = vmatprep.subr.mxu0 0.0
        %806 = vmatpush1.msra.mxu0 1.0
        %807 = vmatprep.subr.mxu0 0.0
        %808 = vmatpush1.msra.mxu0 1.0
        %809 = vmatprep.subr.mxu0 0.0
        %810 = vmatpush1.msra.mxu0 1.0
        %811 = vmatprep.subr.mxu0 0.0
        %812 = vmatpush1.msra.mxu0 1.0
        %813 = vmatprep.subr.mxu0 0.0
        %814 = vmatpush1.msra.mxu0 1.0
        %815 = vmatprep.subr.mxu0 0.0
        %816 = vmatpush1.msra.mxu0 1.0
        %817 = vmatprep.subr.mxu0 0.0
        %818 = vmatpush1.msra.mxu0 1.0
        %819 = vmatprep.subr.mxu0 0.0
        %820 = vmatpush1.msra.mxu0 1.0
        %821 = vmatprep.subr.mxu0 0.0
        %822 = vmatpush1.msra.mxu0 1.0
        %823 = vmatprep.subr.mxu0 0.0
        %824 = vmatpush1.msra.mxu0 1.0
        %825 = vmatprep.subr.mxu0 0.0
        %826 = vmatpush1.msra.mxu0 1.0
        %827 = vmatprep.subr.mxu0 0.0
        %828 = vmatpush1.msra.mxu0 1.0
        %829 = vmatprep.subr.mxu0 0.0
        %830 = vmatpush1.msra.mxu0 1.0
        %831 = vmatprep.subr.mxu0 0.0
        %832 = vmatpush1.msra.mxu0 1.0
        %833 = vmatprep.subr.mxu0 0.0
        %834 = vmatpush1.msra.mxu0 1.0
        %835 = vmatprep.subr.mxu0 0.0
        %836 = vmatpush1.msra.mxu0 1.0
        %837 = vmatprep.subr.mxu0 0.0
        %838 = vmatpush1.msra.mxu0 1.0
        %839 = vmatprep.subr.mxu0 0.0
        %840 = vmatpush1.msra.mxu0 1.0
        %841 = vmatprep.subr.mxu0 0.0
        %842 = vmatpush1.msra.mxu0 1.0
        %843 = vmatprep.subr.mxu0 0.0
        %844 = vmatpush1.msra.mxu0 1.0
        %845 = vmatprep.subr.mxu0 0.0
        %846 = vmatpush1.msra.mxu0 1.0
        %847 = vmatprep.subr.mxu0 0.0
        %848 = vmatpush1.msra.mxu0 1.0
        %849 = vmatprep.subr.mxu0 0.0
        %850 = vmatpush1.msra.mxu0 1.0
        %851 = vmatprep.subr.mxu0 0.0
        %852 = vmatpush1.msra.mxu0 1.0
        %853 = vmatprep.subr.mxu0 0.0
        %854 = vmatpush1.msra.mxu0 1.0
        %855 = vmatprep.subr.mxu0 0.0
        %856 = vmatpush1.msra.mxu0 1.0
        %857 = vmatprep.subr.mxu0 0.0
        %858 = vmatpush1.msra.mxu0 1.0
        %859 = vmatprep.subr.mxu0 0.0
        %860 = vmatpush1.msra.mxu0 1.0
        %v861 = vand.u32 %v269, 4294901760
        %862 = vmatprep.mubr.f32.mxu0 %v861
        %v863 = vand.u32 %v268, 4294901760
        %864 = vmatmul.mubr.f32.gmra.mrb[0].mxu0 %v863
        %v865 = vpop.f32.mrb[0].mxu0
        %v866 = vadd.f32 %v773, %v865
        %v867 = vpop.f32.mrb[0].mxu0
        %v868 = vand.u32 %v271, 4294901760
        %869 = vmatprep.mubr.f32.mxu0 %v868
        %v870 = vand.u32 %v270, 4294901760
        %871 = vmatmul.mubr.f32.gmra.mrb[0].mxu0 %v870
        %v872 = vpop.f32.mrb[0].mxu0
        %v873 = vadd.f32 %v780, %v872
        %v874 = vpop.f32.mrb[0].mxu0
        %v875 = vand.u32 %v273, 4294901760
        %876 = vmatprep.mubr.f32.mxu0 %v875
        %v877 = vand.u32 %v272, 4294901760
        %878 = vmatmul.mubr.f32.gmra.mrb[0].mxu0 %v877
        %v879 = vpop.f32.mrb[0].mxu0
        %v880 = vadd.f32 %v787, %v879
        %v881 = vpop.f32.mrb[0].mxu0
        %v882 = vand.u32 %v275, 4294901760
        %883 = vmatprep.mubr.f32.mxu0 %v882
        %v884 = vand.u32 %v274, 4294901760
        %885 = vmatmul.mubr.f32.gmra.mrb[0].mxu0 %v884
        %v886 = vpop.f32.mrb[0].mxu0
        %v887 = vadd.f32 %v794, %v886
        %v888 = vpop.f32.mrb[0].mxu0
        %889 = vdwg.mxu0
        %v890 = vld [vmem:[%s222] sm:$0xff]
        %v891 = vld [vmem:[%s222 + $0x8] sm:$0xff]
        %v892 = vld [vmem:[%s222 + $0x10] sm:$0xff]
        %v893 = vld [vmem:[%s222 + $0x18] sm:$0xff]
        %v894 = vmul.f32 %v890, 1.442695
        %v895 = vpow.pop %v894
        %v896 = vmul.f32 %v891, 1.442695
        %v897 = vpow.pop %v896
        %v898 = vmul.f32 %v892, 1.442695
        %v899 = vpow.pop %v898
        %v900 = vmul.f32 %v893, 1.442695
        %v901 = vpow.pop %v900
        %v902 = vadd.f32 %v895, %v866
        %v903 = vadd.f32 %v897, %v873
        %v904 = vadd.f32 %v899, %v880
        %v905 = vadd.f32 %v901, %v887
        %v906 = vrcp.pop %v902
        %v907 = vmul.f32 %v895, %v906
        %v908 = vrcp.pop %v903
        %v909 = vmul.f32 %v897, %v908
        %v910 = vrcp.pop %v904
        %v911 = vmul.f32 %v899, %v910
        %v912 = vrcp.pop %v905
        %v913 = vmul.f32 %v901, %v912
        %v914 = vadd.f32 %v907, 1e-06
        %v915 = vadd.f32 %v909, 1e-06
        %v916 = vadd.f32 %v911, 1e-06
        %v917 = vadd.f32 %v913, 1e-06
        %v918 = vlog2.pop %v914
        %v919 = vmul.f32 %v918, 0.6931472
        %v920 = vlog2.pop %v915
        %v921 = vmul.f32 %v920, 0.6931472
        %v922 = vlog2.pop %v916
        %v923 = vmul.f32 %v922, 0.6931472
        %v924 = vlog2.pop %v917
        %v925 = vmul.f32 %v924, 0.6931472
        %v926 = vsub.f32 0.0, %v919
        %v927 = vsub.f32 0.0, %v921
        %v928 = vsub.f32 0.0, %v923
        %v929 = vsub.f32 0.0, %v925
        %s930 = smul.u32 %s23, 32
        %v931 = vlaneseq
        %v932 = vshrl.u32 %v931, 7
        %v933 = vadd.s32 %v932, 8
        %v934 = vadd.s32 %v932, 16
        %v935 = vadd.s32 %v932, 24
        %v936 = vstv %s930
        %v937 = vadd.s32 %v936, %v932
        %v938 = vadd.s32 %v936, %v933
        %v939 = vadd.s32 %v936, %v934
        %v940 = vadd.s32 %v936, %v935
        %vm941 = vcmp.lt.s32.totalorder %v937, 37
        %vm942 = vcmp.lt.s32.totalorder %v938, 37
        %vm943 = vcmp.lt.s32.totalorder %v939, 37
        %vm944 = vcmp.lt.s32.totalorder %v940, 37
        %v945 = vsel %vm941, %v926, 0.0
        %v946 = vsel %vm942, %v927, 0.0
        %v947 = vsel %vm943, %v928, 0.0
        %v948 = vsel %vm944, %v929, 0.0
        %vm949 = vcmask 7168
        %v950 = vsel %vm949, %v945, 0.0
        %v951 = vsel %vm949, %v946, 0.0
        %v952 = vadd.f32 %v950, %v951
        %v953 = vsel %vm949, %v947, 0.0
        %v954 = vadd.f32 %v952, %v953
        %v955 = vsel %vm949, %v948, 0.0
        %v956 = vadd.f32 %v954, %v955
        %957 = vadd.xlane.f32.xlu0 %v956
        %v958 = vpop.xlane.xlu0 %957
        %v959 = vrot.slane %v958, 4
        %v960 = vadd.f32 %v958, %v959
        %v961 = vrot.slane %v960, 2
        %v962 = vadd.f32 %v960, %v961
        %v963 = vrot.slane %v962, 1
        %v964 = vadd.f32 %v962, %v963
        %s965 = vtos %v964
        %vm966 = vcmp.eq.s32.totalorder %v932, 0
        %vm967 = vcmp.eq.s32.totalorder %v261, 0
        %vm968 = vmand %vm966, %vm967
        %v969 = vstv %s965
        %v970 = vsel %vm968, %v969, 0.0
        %971 = vst [vmem:[%s213] sm:$0xff] %v970
        %s972 = sand.u32 %s93, 1
        %s973 = scalar_lea.sflag [#allocation5], %s972
        %s974 = sand.u32 %s93, 1
        %s975 = smul.addr %s974, 8
        %s976 = scalar_lea.vmem [#allocation6], %s975
        // Predicated region
        $region33: #{tpu_custom_call.1} parent=27 // pred_check
          %p977 = pneg %p103
        $region34: #{tpu_custom_call.1} parent=27 // pred_check_branch
          %979 = sbr.rel (%p977) target = $region36
        $region35: #{tpu_custom_call.1} parent=27 // pred_region
          %s981 = ssub.s32 128, 128
          %982 = vsyncadd %s973, %s981
          %s983 = smul.addr %s23, 128
          %s984 = scalar_lea.hbm %s2, %s983
          %s986 = sshll.u32 %s976, 4
          %s987 = int_to_ptr.vmem [resolvable:$true] %s986
          %989 = dma.vmem_to_hbm [thread:$0]  %s987, 128, %s984, %s973
        $region36: #{tpu_custom_call.1} parent=27 // pred_fallthru
          _
      $region28: #{tpu_custom_call.1} parent=5 // pred_fallthru
        _
      %p990 = scmp.le.s32.totalorder 2, %s14
      // Predicated region
      $region37: #{tpu_custom_call.1} parent=5 // pred_check
        %p991 = pneg %p990
      $region38: #{tpu_custom_call.1} parent=5 // pred_check_branch
        %993 = sbr.rel (%p991) target = $region40
      $region39: #{tpu_custom_call.1} parent=5 // pred_region
        %s994 = ssub.s32 %s14, 2
        // Predicated region
        $region41: #{tpu_custom_call.1} parent=39 // pred_check
          %p995 = pneg %p109
        $region42: #{tpu_custom_call.1} parent=39 // pred_check_branch
          %997 = sbr.rel (%p995) target = $region44
        $region43: #{tpu_custom_call.1} parent=39 // pred_region
          %s998 = sand.u32 %s94, 1
          %s999 = scalar_lea.sflag [#allocation5], %s998
          %s1000 = sand.u32 %s94, 1
          %s1001 = smul.addr %s1000, 8
          %s1002 = scalar_lea.vmem [#allocation6], %s1001
          %1003 = dma.done %s999, 128
        $region44: #{tpu_custom_call.1} parent=39 // pred_fallthru
          _
      $region40: #{tpu_custom_call.1} parent=5 // pred_fallthru
        _
    $region6: #{tpu_custom_call.1} parent=1 // loop_footer
      %s18 = sadd.s32 1, %s14
    $region7: #{tpu_custom_call.1} parent=1 // loop_footer_branch
      %13 = sbr.rel target = $region3
    $region8: #{tpu_custom_call.1} parent=1 // loop_exit
      _
    %1004 = vsyncpa [#allocation4], 1
    %s1005 = scalar_lea.sflag [#allocation4], 1
    %1006 = vsyncpa %s1005, 1
    %1007 = vsyncpa [#allocation5], 1
    %s1008 = scalar_lea.sflag [#allocation5], 1
    %1009 = vsyncpa %s1008, 1

</llo_original>
